<compile_context>
chip_gen: v7x
topology: tpu7x:2x2x1
jax: 0.10.0
libtpu: 0.0.40
codegen_flags: <defaults>
</compile_context>

<pallas_src>
import functools

import jax
import jax.numpy as jnp
from jax.experimental import pallas as pl
from jax.experimental.pallas import tpu as pltpu


def _yolo_kernel(x_ref, grid_ref, anch_ref, o_ref, *, stride):
    """One block of `bn` samples, all anchors at once.

    x_ref/o_ref : VMEM (bn, na, C+5, g*g), input / output dtype.
    grid_ref    : VMEM (2, g*g) f32, rows = (grid_x*stride, grid_y*stride).
    anch_ref    : VMEM (na, 2, 1) f32, unscaled (anchor_w, anchor_h).
    """
    pred = x_ref[...].astype(jnp.float32)                    # (bn, na, C+5, gg)

    # boxes: (sigmoid(t) + grid)*stride == sigmoid(t)*stride + grid*stride,
    #        exp(t)*(anchor/stride)*stride == exp(t)*anchor  (stride folded).
    xy   = jax.nn.sigmoid(pred[:, :, 0:2, :]) * stride + grid_ref[...]
    wh   = jnp.exp(pred[:, :, 2:4, :]) * anch_ref[...]
    conf = jax.nn.sigmoid(pred[:, :, 4:5, :])
    cls  = conf * jax.nn.sigmoid(pred[:, :, 5:, :])           # conf * class scores

    out = jnp.concatenate([xy, wh, conf, cls], axis=2)        # (bn, na, C+5, gg)
    o_ref[...] = out.astype(o_ref.dtype)                      # single full-tile store


def yolo_layer(x, anchors, num_classes, img_size, *, channel_major=False):
    """Pallas implementation of YOLOLayer.forward.

    x: (N, na*(num_classes+5), g, g), NCHW (f32 or bf16).
    anchors: (na, 2) float.
    Returns (N, na*g*g, 5+num_classes) by default (PyTorch layout), or the
    lane-dense kernel layout (N, na, 5+num_classes, g*g) if channel_major.
    """
    n, ch, g, _ = x.shape
    na = anchors.shape[0]
    c5 = num_classes + 5
    assert ch == na * c5
    stride = float(img_size) / float(g)
    gg = g * g

    # Pure (free) reshape: NCHW channels are already ordered (na, c5).
    xr = x.reshape(n, na, c5, gg)

    # Host-precomputed constants (tiny, DMA'd once per block, pipelined free).
    idx = jnp.arange(gg, dtype=jnp.int32)
    gx = (idx % g).astype(jnp.float32) * stride
    gy = (idx // g).astype(jnp.float32) * stride
    grid_tbl = jnp.stack([gx, gy], axis=0)                    # (2, gg) f32
    anch_tbl = anchors.astype(jnp.float32).reshape(na, 2, 1)  # unscaled anchors

    # Merge batch rows into each block: target a few MiB per in/out buffer so
    # per-step pipeline overhead (~0.35 us) is amortized while staying well
    # inside v7x's 64 MiB VMEM with double buffering (v5e/v6e have 128 MiB).
    itemsize = jnp.dtype(x.dtype).itemsize
    row_bytes = na * c5 * gg * itemsize
    bn = max(1, min(n, (4 << 20) // max(row_bytes, 1)))
    while n % bn:
        bn -= 1
    n_blocks = n // bn
    vmem_limit = int(min(64 << 20, max(32 << 20, 6 * bn * row_bytes)))

    kernel = functools.partial(_yolo_kernel, stride=stride)

    out = pl.pallas_call(
        kernel,
        out_shape=jax.ShapeDtypeStruct((n, na, c5, gg), x.dtype),
        grid_spec=pltpu.PrefetchScalarGridSpec(
            num_scalar_prefetch=0,
            grid=(n_blocks,),
            in_specs=[
                pl.BlockSpec((bn, na, c5, gg), lambda i: (i, 0, 0, 0)),
                pl.BlockSpec((2, gg), lambda i: (0, 0)),
                pl.BlockSpec((na, 2, 1), lambda i: (0, 0, 0)),
            ],
            out_specs=pl.BlockSpec((bn, na, c5, gg), lambda i: (i, 0, 0, 0)),
        ),
        compiler_params=pltpu.CompilerParams(
            dimension_semantics=("parallel",),
            vmem_limit_bytes=vmem_limit,
        ),
    )(xr, grid_tbl, anch_tbl)

    if channel_major:
        return out  # lane-dense layout, no second HBM pass

    # Module-compatible layout (N, na*g*g, C+5); kept as XLA glue because an
    # in-kernel permute would leave only C+5 lanes in the output tile.
    return out.transpose(0, 1, 3, 2).reshape(n, na * gg, c5)


def yolo_reference(x, anchors, num_classes, img_size):
    """Plain-JAX transcription of YOLOLayer.forward for verification."""
    n, ch, g, _ = x.shape
    na = anchors.shape[0]
    stride = img_size / g
    pred = x.reshape(n, na, num_classes + 5, g, g).transpose(0, 1, 3, 4, 2)
    sx = jax.nn.sigmoid(pred[..., 0])
    sy = jax.nn.sigmoid(pred[..., 1])
    w = pred[..., 2]
    h = pred[..., 3]
    conf = jax.nn.sigmoid(pred[..., 4])
    cls = jax.nn.sigmoid(pred[..., 5:])
    cls = conf[..., None] * cls
    rng = jnp.arange(g, dtype=jnp.float32)
    grid_x = jnp.broadcast_to(rng[None, None, None, :], (n, na, g, g))
    grid_y = jnp.broadcast_to(rng[None, None, :, None], (n, na, g, g))
    aw = (anchors[:, 0] / stride).reshape(1, na, 1, 1)
    ah = (anchors[:, 1] / stride).reshape(1, na, 1, 1)
    a_ = sx + grid_x
    b_ = sy + grid_y
    c_ = jnp.exp(w) * aw
    d_ = jnp.exp(h) * ah
    boxes = jnp.stack([a_, b_, c_, d_], -1)
    return jnp.concatenate(
        [boxes.reshape(n, -1, 4) * stride,
         conf.reshape(n, -1, 1),
         cls.reshape(n, -1, num_classes)], -1)


if __name__ == "__main__":
    # Small, module-consistent shapes: num_classes=3 -> channels = 3*(3+5) = 24.
    num_classes = 3
    num_anchors = 3
    n, g = 2, 16
    img_size = 64                                    # stride = 4.0
    anchors = jnp.array([[10.0, 13.0], [16.0, 30.0], [33.0, 23.0]],
                        dtype=jnp.float32)           # deterministic "params"

    key = jax.random.PRNGKey(0)
    x = jax.random.normal(
        key, (n, num_anchors * (num_classes + 5), g, g), dtype=jnp.float32)

    out = jax.block_until_ready(yolo_layer(x, anchors, num_classes, img_size))
    ref = yolo_reference(x, anchors, num_classes, img_size)

    assert out.shape == (n, num_anchors * g * g, num_classes + 5)
    assert jnp.allclose(out, ref, atol=1e-5, rtol=1e-5)

    print("KERNEL_OK")
</pallas_src>

<mosaic_0001>
module attributes {stable_mosaic.version = 11 : i64} {
  func.func @_yolo_kernel(%arg0: i32, %arg1: memref<2x3x8x256xf32, #tpu.memory_space<vmem>>, %arg2: memref<2x256xf32, #tpu.memory_space<vmem>>, %arg3: memref<3x2x1xf32, #tpu.memory_space<vmem>>, %arg4: memref<2x3x8x256xf32, #tpu.memory_space<vmem>>) attributes {dimension_semantics = [#tpu.dimension_semantics<parallel>], iteration_bounds = array<i64: 1>, scalar_prefetch = 0 : i64, scratch_operands = 0 : i64, tpu.core_type = #tpu.core_type<tc>, window_params = [{transform_indices = @transform_0, window_bounds = array<i64: 2, 3, 8, 256>}, {pipeline_mode = #tpu.pipeline_mode<synchronous>, transform_indices = @transform_1, window_bounds = array<i64: 2, 256>}, {pipeline_mode = #tpu.pipeline_mode<synchronous>, transform_indices = @transform_2, window_bounds = array<i64: 3, 2, 1>}, {transform_indices = @transform_3, window_bounds = array<i64: 2, 3, 8, 256>}]} {
    %c0 = arith.constant 0 : index
    %c0_0 = arith.constant 0 : index
    %c0_1 = arith.constant 0 : index
    %c0_2 = arith.constant 0 : index
    %0 = vector.load %arg1[%c0, %c0_0, %c0_1, %c0_2] : memref<2x3x8x256xf32, #tpu.memory_space<vmem>>, vector<2x3x8x256xf32>
    %1 = vector.extract_strided_slice %0 {offsets = [0, 0, 0, 0], sizes = [2, 3, 2, 256], strides = [1, 1, 1, 1]} : vector<2x3x8x256xf32> to vector<2x3x2x256xf32>
    %2 = arith.negf %1 : vector<2x3x2x256xf32>
    %3 = math.exp %2 : vector<2x3x2x256xf32>
    %cst = arith.constant 1.000000e+00 : f32
    %4 = vector.broadcast %cst : f32 to vector<2x3x2x256xf32>
    %5 = arith.addf %4, %3 : vector<2x3x2x256xf32>
    %6 = arith.divf %4, %5 : vector<2x3x2x256xf32>
    %cst_3 = arith.constant 4.000000e+00 : f32
    %7 = vector.broadcast %cst_3 : f32 to vector<2x3x2x256xf32>
    %8 = arith.mulf %6, %7 : vector<2x3x2x256xf32>
    %c0_4 = arith.constant 0 : index
    %c0_5 = arith.constant 0 : index
    %9 = vector.load %arg2[%c0_4, %c0_5] : memref<2x256xf32, #tpu.memory_space<vmem>>, vector<2x256xf32>
    %10 = vector.shape_cast %9 : vector<2x256xf32> to vector<1x1x2x256xf32>
    %11 = vector.broadcast %10 : vector<1x1x2x256xf32> to vector<2x3x2x256xf32>
    %12 = arith.addf %8, %11 : vector<2x3x2x256xf32>
    %13 = vector.extract_strided_slice %0 {offsets = [0, 0, 2, 0], sizes = [2, 3, 2, 256], strides = [1, 1, 1, 1]} : vector<2x3x8x256xf32> to vector<2x3x2x256xf32>
    %14 = math.exp %13 : vector<2x3x2x256xf32>
    %c0_6 = arith.constant 0 : index
    %c0_7 = arith.constant 0 : index
    %c0_8 = arith.constant 0 : index
    %15 = vector.load %arg3[%c0_6, %c0_7, %c0_8] : memref<3x2x1xf32, #tpu.memory_space<vmem>>, vector<3x2x1xf32>
    %16 = vector.shape_cast %15 : vector<3x2x1xf32> to vector<1x3x2x1xf32>
    %17 = vector.broadcast %16 : vector<1x3x2x1xf32> to vector<2x3x2x256xf32>
    %18 = arith.mulf %14, %17 : vector<2x3x2x256xf32>
    %19 = vector.extract_strided_slice %0 {offsets = [0, 0, 4, 0], sizes = [2, 3, 1, 256], strides = [1, 1, 1, 1]} : vector<2x3x8x256xf32> to vector<2x3x1x256xf32>
    %20 = arith.negf %19 : vector<2x3x1x256xf32>
    %21 = math.exp %20 : vector<2x3x1x256xf32>
    %cst_9 = arith.constant 1.000000e+00 : f32
    %22 = vector.broadcast %cst_9 : f32 to vector<2x3x1x256xf32>
    %23 = arith.addf %22, %21 : vector<2x3x1x256xf32>
    %24 = arith.divf %22, %23 : vector<2x3x1x256xf32>
    %25 = vector.extract_strided_slice %0 {offsets = [0, 0, 5, 0], sizes = [2, 3, 3, 256], strides = [1, 1, 1, 1]} : vector<2x3x8x256xf32> to vector<2x3x3x256xf32>
    %26 = arith.negf %25 : vector<2x3x3x256xf32>
    %27 = math.exp %26 : vector<2x3x3x256xf32>
    %cst_10 = arith.constant 1.000000e+00 : f32
    %28 = vector.broadcast %cst_10 : f32 to vector<2x3x3x256xf32>
    %29 = arith.addf %28, %27 : vector<2x3x3x256xf32>
    %30 = arith.divf %28, %29 : vector<2x3x3x256xf32>
    %31 = vector.broadcast %24 : vector<2x3x1x256xf32> to vector<2x3x3x256xf32>
    %32 = arith.mulf %31, %30 : vector<2x3x3x256xf32>
    %33 = tpu.concatenate %12, %18, %24, %32 in 2 : vector<2x3x2x256xf32>, vector<2x3x2x256xf32>, vector<2x3x1x256xf32>, vector<2x3x3x256xf32> -> vector<2x3x8x256xf32>
    %c0_11 = arith.constant 0 : index
    %c0_12 = arith.constant 0 : index
    %c0_13 = arith.constant 0 : index
    %c0_14 = arith.constant 0 : index
    %34 = vector.load %arg4[%c0_11, %c0_12, %c0_13, %c0_14] : memref<2x3x8x256xf32, #tpu.memory_space<vmem>>, vector<2x3x8x256xf32>
    tpu.vector_store %arg4[%c0_11, %c0_12, %c0_13, %c0_14], %33 {strides = array<i32>} : memref<2x3x8x256xf32, #tpu.memory_space<vmem>>, vector<2x3x8x256xf32>,
    return
  }
  func.func @transform_0(%arg0: i32) -> (i32, i32, i32, i32) {
    %c0_i32 = arith.constant 0 : i32
    %c0_i32_0 = arith.constant 0 : i32
    %c0_i32_1 = arith.constant 0 : i32
    %c0_i32_2 = arith.constant 0 : i32
    return %arg0, %c0_i32, %c0_i32_0, %c0_i32_1 : i32, i32, i32, i32
  }
  func.func @transform_1(%arg0: i32) -> (i32, i32) {
    %c0_i32 = arith.constant 0 : i32
    %c0_i32_0 = arith.constant 0 : i32
    %c0_i32_1 = arith.constant 0 : i32
    return %c0_i32, %c0_i32_0 : i32, i32
  }
  func.func @transform_2(%arg0: i32) -> (i32, i32, i32) {
    %c0_i32 = arith.constant 0 : i32
    %c0_i32_0 = arith.constant 0 : i32
    %c0_i32_1 = arith.constant 0 : i32
    %c0_i32_2 = arith.constant 0 : i32
    return %c0_i32, %c0_i32_0, %c0_i32_1 : i32, i32, i32
  }
  func.func @transform_3(%arg0: i32) -> (i32, i32, i32, i32) {
    %c0_i32 = arith.constant 0 : i32
    %c0_i32_0 = arith.constant 0 : i32
    %c0_i32_1 = arith.constant 0 : i32
    %c0_i32_2 = arith.constant 0 : i32
    return %arg0, %c0_i32, %c0_i32_0, %c0_i32_1 : i32, i32, i32, i32
  }
}

</mosaic_0001>

<llo_original>
// kernel: tpu_custom_call.1
$region0: #{tpu_custom_call.1}
  #allocation0 [shape = 'u32[]', space=smem, size = 0x4, offset = 0x4, fixed_abs, tag = 'smem constant byte address 0x4 - core index']
  #allocation1 [shape = 'u32[144,128]{1,0:T(1,128)}', space=vmem, size = 0x12000, scoped, tag = 'internal scratch']
  %s0 = inlined_call_operand.hbm [shape: f32[2,3,8,256], index: 0, kind: input, shape index: {}]
  %s1 = inlined_call_operand.vmem [shape: f32[2,256], index: 1, kind: input, shape index: {}]
  %s2 = inlined_call_operand.vmem [shape: f32[3,2,1], index: 2, kind: input, shape index: {}]
  %s3 = inlined_call_operand.hbm [shape: f32[2,3,8,256], index: 3, kind: output, shape index: {}]
  %s4 = sld [smem:[#allocation0]]
  $region26: #{tpu_custom_call.1} parent=0
    _
  %s6 = ssub.s32 1, %s4
  %s7 = scalar_select 0, %s6, %s4
  $region1: #{tpu_custom_call.1} parent=0
    #allocation2 [shape = 'u8[49152]{0}', space=vmem, size = 0xc000, scoped, tag = 'input window, operand 0, single buffered']
    #allocation3 [shape = 's32[1]{0}', space=sflag, size = 0x4, scoped, tag = 'scoped memory for tpu_custom_call.1']
    #allocation4 [shape = 's32[1]{0}', space=sflag, size = 0x4, scoped, tag = 'scoped memory for tpu_custom_call.1']
    #allocation5 [shape = 'u8[49152]{0}', space=vmem, size = 0xc000, scoped, tag = 'output window, operand 0, single buffered']
    %8 = vsyncpa [#allocation3], 0
    %9 = vsyncpa [#allocation4], 0
    // Predicated region
    $region2: #{tpu_custom_call.1} parent=1 // pred_check
      _
    $region3: #{tpu_custom_call.1} parent=1 // pred_check_branch
      %11 = sbr.rel (0) target = $region5
    $region4: #{tpu_custom_call.1} parent=1 // pred_region
      %s13 = ssub.s32 1536, 1536
      %14 = vsyncadd [#allocation3], %s13
      %s15 = sshll.u32 [#allocation2], 4
      %s16 = int_to_ptr.vmem [resolvable:$true] %s15
      %21 = dma.hbm_to_vmem [thread:$0]  %s0, 1536, %s16, [#allocation3], 256, 256, 16
    $region5: #{tpu_custom_call.1} parent=1 // pred_fallthru
      _
    // Predicated region
    $region6: #{tpu_custom_call.1} parent=1 // pred_check
      _
    $region7: #{tpu_custom_call.1} parent=1 // pred_check_branch
      %23 = sbr.rel (0) target = $region9
    $region8: #{tpu_custom_call.1} parent=1 // pred_region
      _
    $region9: #{tpu_custom_call.1} parent=1 // pred_fallthru
      _
    // Predicated region
    $region10: #{tpu_custom_call.1} parent=1 // pred_check
      _
    $region11: #{tpu_custom_call.1} parent=1 // pred_check_branch
      %25 = sbr.rel (0) target = $region13
    $region12: #{tpu_custom_call.1} parent=1 // pred_region
      _
    $region13: #{tpu_custom_call.1} parent=1 // pred_fallthru
      _
    // Predicated region
    $region14: #{tpu_custom_call.1} parent=1 // pred_check
      _
    $region15: #{tpu_custom_call.1} parent=1 // pred_check_branch
      %27 = sbr.rel (0) target = $region17
    $region16: #{tpu_custom_call.1} parent=1 // pred_region
      %28 = dma.done [#allocation3], 1536
    $region17: #{tpu_custom_call.1} parent=1 // pred_fallthru
      _
    %v29 = vld [vmem:[#allocation2] sm:$0xff]
    %v30 = vld [vmem:[#allocation2 + $0x8] sm:$0xff]
    %v31 = vld [vmem:[#allocation2 + $0x10] sm:$0xff]
    %v32 = vld [vmem:[#allocation2 + $0x18] sm:$0xff]
    %v33 = vld [vmem:[#allocation2 + $0x20] sm:$0xff]
    %v34 = vld [vmem:[#allocation2 + $0x28] sm:$0xff]
    %v35 = vld [vmem:[#allocation2 + $0x30] sm:$0xff]
    %v36 = vld [vmem:[#allocation2 + $0x38] sm:$0xff]
    %v37 = vld [vmem:[#allocation2 + $0x40] sm:$0xff]
    %v38 = vld [vmem:[#allocation2 + $0x48] sm:$0xff]
    %v39 = vld [vmem:[#allocation2 + $0x50] sm:$0xff]
    %v40 = vld [vmem:[#allocation2 + $0x58] sm:$0xff]
    %v41 = vxor.u32 %v29, 2147483648
    %v42 = vxor.u32 %v30, 2147483648
    %v43 = vxor.u32 %v31, 2147483648
    %v44 = vxor.u32 %v32, 2147483648
    %v45 = vxor.u32 %v33, 2147483648
    %v46 = vxor.u32 %v34, 2147483648
    %v47 = vxor.u32 %v35, 2147483648
    %v48 = vxor.u32 %v36, 2147483648
    %v49 = vxor.u32 %v37, 2147483648
    %v50 = vxor.u32 %v38, 2147483648
    %v51 = vxor.u32 %v39, 2147483648
    %v52 = vxor.u32 %v40, 2147483648
    %v53 = vmul.f32 %v41, 1.442695
    %v54 = vpow.pop %v53
    %v55 = vmul.f32 %v42, 1.442695
    %v56 = vpow.pop %v55
    %v57 = vmul.f32 %v43, 1.442695
    %v58 = vpow.pop %v57
    %v59 = vmul.f32 %v44, 1.442695
    %v60 = vpow.pop %v59
    %v61 = vmul.f32 %v45, 1.442695
    %v62 = vpow.pop %v61
    %v63 = vmul.f32 %v46, 1.442695
    %v64 = vpow.pop %v63
    %v65 = vmul.f32 %v47, 1.442695
    %v66 = vpow.pop %v65
    %v67 = vmul.f32 %v48, 1.442695
    %v68 = vpow.pop %v67
    %v69 = vmul.f32 %v49, 1.442695
    %v70 = vpow.pop %v69
    %v71 = vmul.f32 %v50, 1.442695
    %v72 = vpow.pop %v71
    %v73 = vmul.f32 %v51, 1.442695
    %v74 = vpow.pop %v73
    %v75 = vmul.f32 %v52, 1.442695
    %v76 = vpow.pop %v75
    %v77 = vadd.f32 %v54, 1.0
    %v78 = vadd.f32 %v56, 1.0
    %v79 = vadd.f32 %v58, 1.0
    %v80 = vadd.f32 %v60, 1.0
    %v81 = vadd.f32 %v62, 1.0
    %v82 = vadd.f32 %v64, 1.0
    %v83 = vadd.f32 %v66, 1.0
    %v84 = vadd.f32 %v68, 1.0
    %v85 = vadd.f32 %v70, 1.0
    %v86 = vadd.f32 %v72, 1.0
    %v87 = vadd.f32 %v74, 1.0
    %v88 = vadd.f32 %v76, 1.0
    %v89 = vrcp.pop %v77
    %v90 = vmul.f32 1.0, %v89
    %v91 = vrcp.pop %v78
    %v92 = vmul.f32 1.0, %v91
    %v93 = vrcp.pop %v79
    %v94 = vmul.f32 1.0, %v93
    %v95 = vrcp.pop %v80
    %v96 = vmul.f32 1.0, %v95
    %v97 = vrcp.pop %v81
    %v98 = vmul.f32 1.0, %v97
    %v99 = vrcp.pop %v82
    %v100 = vmul.f32 1.0, %v99
    %v101 = vrcp.pop %v83
    %v102 = vmul.f32 1.0, %v101
    %v103 = vrcp.pop %v84
    %v104 = vmul.f32 1.0, %v103
    %v105 = vrcp.pop %v85
    %v106 = vmul.f32 1.0, %v105
    %v107 = vrcp.pop %v86
    %v108 = vmul.f32 1.0, %v107
    %v109 = vrcp.pop %v87
    %v110 = vmul.f32 1.0, %v109
    %v111 = vrcp.pop %v88
    %v112 = vmul.f32 1.0, %v111
    %v113 = vmul.f32 %v90, 4.0
    %v114 = vmul.f32 %v92, 4.0
    %v115 = vmul.f32 %v94, 4.0
    %v116 = vmul.f32 %v96, 4.0
    %v117 = vmul.f32 %v98, 4.0
    %v118 = vmul.f32 %v100, 4.0
    %v119 = vmul.f32 %v102, 4.0
    %v120 = vmul.f32 %v104, 4.0
    %v121 = vmul.f32 %v106, 4.0
    %v122 = vmul.f32 %v108, 4.0
    %v123 = vmul.f32 %v110, 4.0
    %v124 = vmul.f32 %v112, 4.0
    %v125 = vld [vmem:[%s1] sm:$0xf]
    %v128 = vunpack.c.l.s4 1983009808
    %v129 = vunpack.c.0.s8 %v128
    %v130 = vlaneseq
    %v131 = vshrl.u32 %v130, 7
    %v132 = vsub.s32 %v129, %v131
    %v133 = vrot.slane %v125, %v132
    %v134 = vcombine.high %v133, %v133
    %v137 = vadd.f32 %v113, %v133
    %v138 = vadd.f32 %v114, %v134
    %v139 = vadd.f32 %v115, %v133
    %v140 = vadd.f32 %v116, %v134
    %v141 = vadd.f32 %v117, %v133
    %v142 = vadd.f32 %v118, %v134
    %v143 = vadd.f32 %v119, %v133
    %v144 = vadd.f32 %v120, %v134
    %v145 = vadd.f32 %v121, %v133
    %v146 = vadd.f32 %v122, %v134
    %v147 = vadd.f32 %v123, %v133
    %v148 = vadd.f32 %v124, %v134
    %v149 = vmul.f32 %v29, 1.442695
    %v150 = vpow.pop %v149
    %v151 = vmul.f32 %v30, 1.442695
    %v152 = vpow.pop %v151
    %v153 = vmul.f32 %v31, 1.442695
    %v154 = vpow.pop %v153
    %v155 = vmul.f32 %v32, 1.442695
    %v156 = vpow.pop %v155
    %v157 = vmul.f32 %v33, 1.442695
    %v158 = vpow.pop %v157
    %v159 = vmul.f32 %v34, 1.442695
    %v160 = vpow.pop %v159
    %v161 = vmul.f32 %v35, 1.442695
    %v162 = vpow.pop %v161
    %v163 = vmul.f32 %v36, 1.442695
    %v164 = vpow.pop %v163
    %v165 = vmul.f32 %v37, 1.442695
    %v166 = vpow.pop %v165
    %v167 = vmul.f32 %v38, 1.442695
    %v168 = vpow.pop %v167
    %v169 = vmul.f32 %v39, 1.442695
    %v170 = vpow.pop %v169
    %v171 = vmul.f32 %v40, 1.442695
    %v172 = vpow.pop %v171
    %v173 = vld [vmem:[%s2] sm:$0x3]
    %v174 = vld [vmem:[%s2 + $0x2] sm:$0x3]
    %v175 = vld [vmem:[%s2 + $0x4] sm:$0x3]
    %177 = vset.pattern.permute.xlu0 0
    %178 = vperm.xlu0 %177, %v173
    %v179 = vpop.permute.xlu0 %178
    %181 = vset.pattern.permute.xlu0 0
    %182 = vperm.xlu0 %181, %v174
    %v183 = vpop.permute.xlu0 %182
    %185 = vset.pattern.permute.xlu0 0
    %186 = vperm.xlu0 %185, %v175
    %v187 = vpop.permute.xlu0 %186
    %v188 = vrot.slane %v179, 6
    %v189 = vrot.slane %v183, 6
    %v190 = vrot.slane %v187, 6
    %v194 = vmul.f32 %v150, %v188
    %v195 = vmul.f32 %v152, %v188
    %v196 = vmul.f32 %v154, %v189
    %v197 = vmul.f32 %v156, %v189
    %v198 = vmul.f32 %v158, %v190
    %v199 = vmul.f32 %v160, %v190
    %v200 = vmul.f32 %v162, %v188
    %v201 = vmul.f32 %v164, %v188
    %v202 = vmul.f32 %v166, %v189
    %v203 = vmul.f32 %v168, %v189
    %v204 = vmul.f32 %v170, %v190
    %v205 = vmul.f32 %v172, %v190
    %v206 = vlaneseq
    %v207 = vshrl.u32 %v206, 7
    %v208 = vsub.s32 4, %v207
    %v209 = vrot.slane %v90, %v208
    %v210 = vlaneseq
    %v211 = vshrl.u32 %v210, 7
    %v212 = vsub.s32 4, %v211
    %v213 = vrot.slane %v92, %v212
    %v214 = vlaneseq
    %v215 = vshrl.u32 %v214, 7
    %v216 = vsub.s32 4, %v215
    %v217 = vrot.slane %v94, %v216
    %v218 = vlaneseq
    %v219 = vshrl.u32 %v218, 7
    %v220 = vsub.s32 4, %v219
    %v221 = vrot.slane %v96, %v220
    %v222 = vlaneseq
    %v223 = vshrl.u32 %v222, 7
    %v224 = vsub.s32 4, %v223
    %v225 = vrot.slane %v98, %v224
    %v226 = vlaneseq
    %v227 = vshrl.u32 %v226, 7
    %v228 = vsub.s32 4, %v227
    %v229 = vrot.slane %v100, %v228
    %v230 = vlaneseq
    %v231 = vshrl.u32 %v230, 7
    %v232 = vsub.s32 4, %v231
    %v233 = vrot.slane %v102, %v232
    %v234 = vlaneseq
    %v235 = vshrl.u32 %v234, 7
    %v236 = vsub.s32 4, %v235
    %v237 = vrot.slane %v104, %v236
    %v238 = vlaneseq
    %v239 = vshrl.u32 %v238, 7
    %v240 = vsub.s32 4, %v239
    %v241 = vrot.slane %v106, %v240
    %v242 = vlaneseq
    %v243 = vshrl.u32 %v242, 7
    %v244 = vsub.s32 4, %v243
    %v245 = vrot.slane %v108, %v244
    %v246 = vlaneseq
    %v247 = vshrl.u32 %v246, 7
    %v248 = vsub.s32 4, %v247
    %v249 = vrot.slane %v110, %v248
    %v250 = vlaneseq
    %v251 = vshrl.u32 %v250, 7
    %v252 = vsub.s32 4, %v251
    %v253 = vrot.slane %v112, %v252
    %v254 = vmul.f32 %v209, %v90
    %v255 = vmul.f32 %v213, %v92
    %v256 = vmul.f32 %v217, %v94
    %v257 = vmul.f32 %v221, %v96
    %v258 = vmul.f32 %v225, %v98
    %v259 = vmul.f32 %v229, %v100
    %v260 = vmul.f32 %v233, %v102
    %v261 = vmul.f32 %v237, %v104
    %v262 = vmul.f32 %v241, %v106
    %v263 = vmul.f32 %v245, %v108
    %v264 = vmul.f32 %v249, %v110
    %v265 = vmul.f32 %v253, %v112
    %vm266 = vcmask 1041408
    %v267 = vsel %vm266, %v137, %v194
    %v268 = vsel %vm266, %v138, %v195
    %v269 = vsel %vm266, %v139, %v196
    %v270 = vsel %vm266, %v140, %v197
    %v271 = vsel %vm266, %v141, %v198
    %v272 = vsel %vm266, %v142, %v199
    %v273 = vsel %vm266, %v143, %v200
    %v274 = vsel %vm266, %v144, %v201
    %v275 = vsel %vm266, %v145, %v202
    %v276 = vsel %vm266, %v146, %v203
    %v277 = vsel %vm266, %v147, %v204
    %v278 = vsel %vm266, %v148, %v205
    %vm279 = vcmask 1043456
    %v280 = vsel %vm279, %v267, %v90
    %v281 = vsel %vm279, %v268, %v92
    %v282 = vsel %vm279, %v269, %v94
    %v283 = vsel %vm279, %v270, %v96
    %v284 = vsel %vm279, %v271, %v98
    %v285 = vsel %vm279, %v272, %v100
    %v286 = vsel %vm279, %v273, %v102
    %v287 = vsel %vm279, %v274, %v104
    %v288 = vsel %vm279, %v275, %v106
    %v289 = vsel %vm279, %v276, %v108
    %v290 = vsel %vm279, %v277, %v110
    %v291 = vsel %vm279, %v278, %v112
    %vm292 = vcmask 1044480
    %v293 = vsel %vm292, %v280, %v254
    %v294 = vsel %vm292, %v281, %v255
    %v295 = vsel %vm292, %v282, %v256
    %v296 = vsel %vm292, %v283, %v257
    %v297 = vsel %vm292, %v284, %v258
    %v298 = vsel %vm292, %v285, %v259
    %v299 = vsel %vm292, %v286, %v260
    %v300 = vsel %vm292, %v287, %v261
    %v301 = vsel %vm292, %v288, %v262
    %v302 = vsel %vm292, %v289, %v263
    %v303 = vsel %vm292, %v290, %v264
    %v304 = vsel %vm292, %v291, %v265
    %305 = vst [vmem:[#allocation5] sm:$0xff] %v293
    %306 = vst [vmem:[#allocation5 + $0x8] sm:$0xff] %v294
    %307 = vst [vmem:[#allocation5 + $0x10] sm:$0xff] %v295
    %308 = vst [vmem:[#allocation5 + $0x18] sm:$0xff] %v296
    %309 = vst [vmem:[#allocation5 + $0x20] sm:$0xff] %v297
    %310 = vst [vmem:[#allocation5 + $0x28] sm:$0xff] %v298
    %311 = vst [vmem:[#allocation5 + $0x30] sm:$0xff] %v299
    %312 = vst [vmem:[#allocation5 + $0x38] sm:$0xff] %v300
    %313 = vst [vmem:[#allocation5 + $0x40] sm:$0xff] %v301
    %314 = vst [vmem:[#allocation5 + $0x48] sm:$0xff] %v302
    %315 = vst [vmem:[#allocation5 + $0x50] sm:$0xff] %v303
    %316 = vst [vmem:[#allocation5 + $0x58] sm:$0xff] %v304
    // Predicated region
    $region18: #{tpu_custom_call.1} parent=1 // pred_check
      _
    $region19: #{tpu_custom_call.1} parent=1 // pred_check_branch
      %318 = sbr.rel (0) target = $region21
    $region20: #{tpu_custom_call.1} parent=1 // pred_region
      %s320 = ssub.s32 1536, 1536
      %321 = vsyncadd [#allocation4], %s320
      %s322 = sshll.u32 [#allocation5], 4
      %s323 = int_to_ptr.vmem [resolvable:$true] %s322
      %328 = dma.vmem_to_hbm [thread:$0]  %s323, 1536, %s3, [#allocation4], 256, 256, 16
    $region21: #{tpu_custom_call.1} parent=1 // pred_fallthru
      _
    // Predicated region
    $region22: #{tpu_custom_call.1} parent=1 // pred_check
      _
    $region23: #{tpu_custom_call.1} parent=1 // pred_check_branch
      %330 = sbr.rel (0) target = $region25
    $region24: #{tpu_custom_call.1} parent=1 // pred_region
      %331 = dma.done [#allocation4], 1536
    $region25: #{tpu_custom_call.1} parent=1 // pred_fallthru
      _
    %332 = vsyncpa [#allocation3], 1
    %333 = vsyncpa [#allocation4], 1

</llo_original>
